<compile_context>
chip_gen: v5e
topology: v5e:2x2
jax: 0.10.0
libtpu: 0.0.40
codegen_flags: <defaults>
</compile_context>

<pallas_src>
import functools

import jax
import jax.numpy as jnp
from jax.experimental import pallas as pl
from jax.experimental.pallas import tpu as pltpu


def _lm_head_argmax_kernel(x_ref, w_ref, b_ref, pmax_ref, pidx_ref,
                           run_max, run_idx, *, v_actual):
    """One grid step: one (tile_v, H) weight tile, streaming flattened argmax.

    Grid: (n_splits [parallel], n_steps [arbitrary / reduction]).

    x_ref   : (S, H)           activations, resident across the whole grid
    w_ref   : (tile_v, H)      lm-head weight tile, native nn.Linear layout
    b_ref   : (1, tile_v) f32  bias tile (-inf on padded vocab columns)
    pmax_ref: (1, 8, 128) f32  per-split partial max     (written on last step)
    pidx_ref: (1, 8, 128) i32  per-split partial argmax  (flattened index)
    run_max : (S, tile_v) f32  VMEM scratch -- elementwise running max
    run_idx : (S, tile_v) i32  VMEM scratch -- elementwise running flat index
    """
    c = pl.program_id(0)          # vocab split (one per TensorCore on v7x)
    j = pl.program_id(1)          # vocab tile within this split
    n_steps = pl.num_programs(1)
    tile_v = w_ref.shape[0]

    @pl.when(j == 0)
    def _init():
        run_max[...] = jnp.full_like(run_max, -jnp.inf)
        run_idx[...] = jnp.zeros_like(run_idx)

    # MXU matmul in the weight's native (V, H) layout: contract H of (S, H)
    # with H of (tile_v, H); accumulate in f32.  No transpose, no f32 upcast.
    logits = jax.lax.dot_general(
        x_ref[...], w_ref[...],
        dimension_numbers=(((1,), (1,)), ((), ())),
        preferred_element_type=jnp.float32,
    ) + b_ref[...]

    # Flattened (row-major over the *un-padded* (S, V)) index of every logit.
    col0 = (c * n_steps + j) * tile_v
    rows = jax.lax.broadcasted_iota(jnp.int32, logits.shape, 0)
    cols = jax.lax.broadcasted_iota(jnp.int32, logits.shape, 1)
    flat = rows * v_actual + (col0 + cols)

    # Pure-VPU elementwise running (max, index).  Strict '>' keeps the earliest
    # (smallest flat index) candidate per position, matching torch.argmax.
    better = logits > run_max[...]
    run_max[...] = jnp.where(better, logits, run_max[...])
    run_idx[...] = jnp.where(better, flat, run_idx[...])

    # Single cross-lane (XLU) reduction per split, only on the final step.
    @pl.when(j == n_steps - 1)
    def _finalize():
        m = run_max[...]
        gmax = jnp.max(m)
        sentinel = jnp.iinfo(jnp.int32).max
        gidx = jnp.min(jnp.where(m == gmax, run_idx[...], sentinel))
        pmax_ref[...] = jnp.full(pmax_ref.shape, gmax, jnp.float32)
        pidx_ref[...] = jnp.full(pidx_ref.shape, gidx, jnp.int32)


def lm_forward(hidden_states, weight, bias, *, tile_v=512, n_splits=2):
    """Equivalent of Lm.forward: argmax over all logits of Linear(hidden_states).

    hidden_states: (S, H)  activations (bf16 recommended)
    weight       : (V, H)  lm-head weight, native nn.Linear layout
    bias         : (V,)    lm-head bias
    returns      : int32 scalar, flattened argmax index (== torch.argmax)
    """
    S, H = hidden_states.shape
    V, H2 = weight.shape
    assert H == H2, "weight / hidden size mismatch"
    assert tile_v % 128 == 0, "vocab tile must be lane-dense (multiple of 128)"
    # TODO(synk): flat indices are int32 (torch.argmax is int64); S*V must stay
    # below 2**31 — use a (row, col) pair for larger logits tensors.
    assert S * V < 2 ** 31

    if hidden_states.dtype != weight.dtype:
        hidden_states = hidden_states.astype(weight.dtype)

    # Pad the vocab up to a multiple of n_splits * tile_v.  Padded columns get
    # zero weights and -inf bias so they can never win the argmax.  (In a real
    # serving stack this padding happens once at weight-load time, not per call.)
    chunk = n_splits * tile_v
    v_pad = pl.cdiv(V, chunk) * chunk
    bias_f32 = bias.astype(jnp.float32)
    if v_pad != V:
        weight = jnp.pad(weight, ((0, v_pad - V), (0, 0)))
        bias_f32 = jnp.pad(bias_f32, (0, v_pad - V), constant_values=-jnp.inf)
    bias2d = bias_f32.reshape(1, v_pad)
    n_steps = v_pad // chunk      # vocab tiles per split

    # VMEM budget: double-buffered weight/bias tiles + resident x + scratch +
    # logits temporary, with margin.  Clamp to [32 MiB, 100 MiB] so the tile
    # size stays safe on v7x's 64 MiB VMEM while unlocking bigger tiles on v6e.
    w_tile_bytes = tile_v * H * weight.dtype.itemsize
    x_bytes = S * H * hidden_states.dtype.itemsize
    est = (2 * (w_tile_bytes + tile_v * 4) + 2 * x_bytes
           + 5 * S * tile_v * 4 + 4 * (8 * 128 * 4) + (4 << 20))
    vmem_limit = int(min(max(est, 32 << 20), 100 << 20))

    # TODO(synk): for prefill-sized S, add an S grid axis (per-S-block partials)
    # instead of keeping x and the (S, tile_v) logits fully resident.
    kernel = functools.partial(_lm_head_argmax_kernel, v_actual=V)
    pmax, pidx = pl.pallas_call(
        kernel,
        out_shape=(
            jax.ShapeDtypeStruct((n_splits, 8, 128), jnp.float32),
            jax.ShapeDtypeStruct((n_splits, 8, 128), jnp.int32),
        ),
        grid_spec=pltpu.PrefetchScalarGridSpec(
            num_scalar_prefetch=0,
            grid=(n_splits, n_steps),
            in_specs=[
                pl.BlockSpec((S, H), lambda c, j: (0, 0)),              # x resident
                pl.BlockSpec((tile_v, H), lambda c, j: (c * n_steps + j, 0)),  # W tile
                pl.BlockSpec((1, tile_v), lambda c, j: (0, c * n_steps + j)),  # bias
            ],
            out_specs=[
                pl.BlockSpec((1, 8, 128), lambda c, j: (c, 0, 0)),
                pl.BlockSpec((1, 8, 128), lambda c, j: (c, 0, 0)),
            ],
            scratch_shapes=[
                pltpu.VMEM((S, tile_v), jnp.float32),   # running max
                pltpu.VMEM((S, tile_v), jnp.int32),     # running flat index
            ],
        ),
        compiler_params=pltpu.CompilerParams(
            dimension_semantics=("parallel", "arbitrary"),
            vmem_limit_bytes=vmem_limit,
        ),
    )(hidden_states, weight, bias2d)

    # Tiny cross-split merge (one (max, idx) pair per split) in plain JAX;
    # ties resolve toward the smaller flattened index (first occurrence).
    pmax_s = pmax[:, 0, 0]
    pidx_s = pidx[:, 0, 0]
    gmax = jnp.max(pmax_s)
    token = jnp.min(jnp.where(pmax_s == gmax, pidx_s, jnp.iinfo(jnp.int32).max))
    return token


if __name__ == "__main__":
    # Small shapes consistent with the module: decode-sized seq, small hidden,
    # vocab chosen NOT to be a multiple of the tile to exercise padding/masking.
    S, H, V = 2, 32, 1000

    key = jax.random.PRNGKey(0)
    k_x, k_w, k_b = jax.random.split(key, 3)

    hidden_states = jax.random.normal(k_x, (S, H), dtype=jnp.float32).astype(jnp.bfloat16)
    weight = (jax.random.normal(k_w, (V, H), dtype=jnp.float32) * 0.05).astype(jnp.bfloat16)
    bias = jax.random.normal(k_b, (V,), dtype=jnp.float32) * 0.01

    token = jax.block_until_ready(lm_forward(hidden_states, weight, bias))

    # Pure-JAX reference of the same forward pass (f32 math on the bf16 params).
    logits_ref = (hidden_states.astype(jnp.float32)
                  @ weight.astype(jnp.float32).T + bias)
    token_ref = jnp.argmax(logits_ref)   # flattened argmax, like torch.argmax
    assert int(token) == int(token_ref), (int(token), int(token_ref))

    print("KERNEL_OK")
</pallas_src>

<mosaic_0001>
module attributes {stable_mosaic.version = 11 : i64} {
  func.func @_lm_head_argmax_kernel(%arg0: i32, %arg1: i32, %arg2: memref<2x32xbf16, #tpu.memory_space<vmem>>, %arg3: memref<512x32xbf16, #tpu.memory_space<vmem>>, %arg4: memref<1x512xf32, #tpu.memory_space<vmem>>, %arg5: memref<1x8x128xf32, #tpu.memory_space<vmem>>, %arg6: memref<1x8x128xi32, #tpu.memory_space<vmem>>, %arg7: memref<2x512xf32, #tpu.memory_space<vmem>>, %arg8: memref<2x512xi32, #tpu.memory_space<vmem>>) attributes {dimension_semantics = [#tpu.dimension_semantics<parallel>, #tpu.dimension_semantics<arbitrary>], iteration_bounds = array<i64: 2, 1>, scalar_prefetch = 0 : i64, scratch_operands = 2 : i64, tpu.core_type = #tpu.core_type<tc>, window_params = [{pipeline_mode = #tpu.pipeline_mode<synchronous>, transform_indices = @transform_0, window_bounds = array<i64: 2, 32>}, {transform_indices = @transform_1, window_bounds = array<i64: 512, 32>}, {transform_indices = @transform_2, window_bounds = array<i64: 1, 512>}, {transform_indices = @transform_3, window_bounds = array<i64: 1, 8, 128>}, {transform_indices = @transform_4, window_bounds = array<i64: 1, 8, 128>}]} {
    %c0_i32 = arith.constant 0 : i32
    %0 = arith.cmpi eq, %arg1, %c0_i32 : i32
    %1 = arith.extui %0 : i1 to i32
    %c0_i32_0 = arith.constant 0 : i32
    %2 = arith.cmpi ne, %1, %c0_i32_0 : i32
    scf.if %2 {
      %cst_18 = arith.constant 0xFF800000 : f32
      %30 = vector.broadcast %cst_18 : f32 to vector<2x512xf32>
      %c0_19 = arith.constant 0 : index
      %c0_20 = arith.constant 0 : index
      %31 = vector.load %arg7[%c0_19, %c0_20] : memref<2x512xf32, #tpu.memory_space<vmem>>, vector<2x512xf32>
      tpu.vector_store %arg7[%c0_19, %c0_20], %30 {strides = array<i32>} : memref<2x512xf32, #tpu.memory_space<vmem>>, vector<2x512xf32>,
      %c0_i32_21 = arith.constant 0 : i32
      %32 = vector.broadcast %c0_i32_21 : i32 to vector<2x512xi32>
      %c0_22 = arith.constant 0 : index
      %c0_23 = arith.constant 0 : index
      %33 = vector.load %arg8[%c0_22, %c0_23] : memref<2x512xi32, #tpu.memory_space<vmem>>, vector<2x512xi32>
      tpu.vector_store %arg8[%c0_22, %c0_23], %32 {strides = array<i32>} : memref<2x512xi32, #tpu.memory_space<vmem>>, vector<2x512xi32>,
    } else {
    }
    %c0 = arith.constant 0 : index
    %c0_1 = arith.constant 0 : index
    %3 = vector.load %arg2[%c0, %c0_1] : memref<2x32xbf16, #tpu.memory_space<vmem>>, vector<2x32xbf16>
    %c0_2 = arith.constant 0 : index
    %c0_3 = arith.constant 0 : index
    %4 = vector.load %arg3[%c0_2, %c0_3] : memref<512x32xbf16, #tpu.memory_space<vmem>>, vector<512x32xbf16>
    %cst = arith.constant dense<0.000000e+00> : vector<2x512xf32>
    %5 = tpu.matmul %3, %4, %cst {dimension_numbers = #tpu.dot_dimension_numbers<[1], [1], [0], [0], [0, 0, 1, 0], [], []>} : vector<2x32xbf16>, vector<512x32xbf16>, vector<2x512xf32> -> vector<2x512xf32>
    %c0_4 = arith.constant 0 : index
    %c0_5 = arith.constant 0 : index
    %6 = vector.load %arg4[%c0_4, %c0_5] : memref<1x512xf32, #tpu.memory_space<vmem>>, vector<1x512xf32>
    %7 = vector.broadcast %6 : vector<1x512xf32> to vector<2x512xf32>
    %8 = arith.addf %5, %7 : vector<2x512xf32>
    %c1_i32 = arith.constant 1 : i32
    %9 = arith.muli %arg0, %c1_i32 : i32
    %10 = arith.addi %9, %arg1 : i32
    %c512_i32 = arith.constant 512 : i32
    %11 = arith.muli %10, %c512_i32 : i32
    %12 = tpu.iota {dimensions = array<i32: 0>} : vector<2x512xi32>
    %13 = tpu.iota {dimensions = array<i32: 1>} : vector<2x512xi32>
    %c1000_i32 = arith.constant 1000 : i32
    %14 = vector.broadcast %c1000_i32 : i32 to vector<2x512xi32>
    %15 = arith.muli %12, %14 : vector<2x512xi32>
    %16 = vector.broadcast %11 : i32 to vector<2x512xi32>
    %17 = arith.addi %16, %13 : vector<2x512xi32>
    %18 = arith.addi %15, %17 : vector<2x512xi32>
    %c0_6 = arith.constant 0 : index
    %c0_7 = arith.constant 0 : index
    %19 = vector.load %arg7[%c0_6, %c0_7] : memref<2x512xf32, #tpu.memory_space<vmem>>, vector<2x512xf32>
    %20 = arith.cmpf ogt, %8, %19 : vector<2x512xf32>
    %c0_8 = arith.constant 0 : index
    %c0_9 = arith.constant 0 : index
    %21 = vector.load %arg7[%c0_8, %c0_9] : memref<2x512xf32, #tpu.memory_space<vmem>>, vector<2x512xf32>
    %22 = arith.select %20, %8, %21 : vector<2x512xi1>, vector<2x512xf32>
    %c0_10 = arith.constant 0 : index
    %c0_11 = arith.constant 0 : index
    %23 = vector.load %arg7[%c0_10, %c0_11] : memref<2x512xf32, #tpu.memory_space<vmem>>, vector<2x512xf32>
    tpu.vector_store %arg7[%c0_10, %c0_11], %22 {strides = array<i32>} : memref<2x512xf32, #tpu.memory_space<vmem>>, vector<2x512xf32>,
    %c0_12 = arith.constant 0 : index
    %c0_13 = arith.constant 0 : index
    %24 = vector.load %arg8[%c0_12, %c0_13] : memref<2x512xi32, #tpu.memory_space<vmem>>, vector<2x512xi32>
    %25 = arith.select %20, %18, %24 : vector<2x512xi1>, vector<2x512xi32>
    %c0_14 = arith.constant 0 : index
    %c0_15 = arith.constant 0 : index
    %26 = vector.load %arg8[%c0_14, %c0_15] : memref<2x512xi32, #tpu.memory_space<vmem>>, vector<2x512xi32>
    tpu.vector_store %arg8[%c0_14, %c0_15], %25 {strides = array<i32>} : memref<2x512xi32, #tpu.memory_space<vmem>>, vector<2x512xi32>,
    %c0_i32_16 = arith.constant 0 : i32
    %27 = arith.cmpi eq, %arg1, %c0_i32_16 : i32
    %28 = arith.extui %27 : i1 to i32
    %c0_i32_17 = arith.constant 0 : i32
    %29 = arith.cmpi ne, %28, %c0_i32_17 : i32
    scf.if %29 {
      %c0_18 = arith.constant 0 : index
      %c0_19 = arith.constant 0 : index
      %30 = vector.load %arg7[%c0_18, %c0_19] : memref<2x512xf32, #tpu.memory_space<vmem>>, vector<2x512xf32>
      %31 = vector.shape_cast %30 : vector<2x512xf32> to vector<1x2x512xf32>
      %cst_20 = arith.constant dense<0xFF800000> : vector<1xf32>
      %32 = vector.multi_reduction <maximumf>, %31, %cst_20 [1, 2] : vector<1x2x512xf32> to vector<1xf32>
      %33 = vector.shape_cast %32 : vector<1xf32> to vector<1x1x1xf32>
      %34 = vector.extract %33[0, 0, 0] : f32 from vector<1x1x1xf32>
      %35 = vector.broadcast %34 : f32 to vector<2x512xf32>
      %36 = arith.cmpf oeq, %30, %35 : vector<2x512xf32>
      %c0_21 = arith.constant 0 : index
      %c0_22 = arith.constant 0 : index
      %37 = vector.load %arg8[%c0_21, %c0_22] : memref<2x512xi32, #tpu.memory_space<vmem>>, vector<2x512xi32>
      %c2147483647_i32 = arith.constant 2147483647 : i32
      %38 = vector.broadcast %c2147483647_i32 : i32 to vector<2x512xi32>
      %39 = arith.select %36, %37, %38 : vector<2x512xi1>, vector<2x512xi32>
      %40 = vector.shape_cast %39 : vector<2x512xi32> to vector<1x2x512xi32>
      %cst_23 = arith.constant dense<2147483647> : vector<1xi32>
      %41 = vector.multi_reduction <minsi>, %40, %cst_23 [1, 2] : vector<1x2x512xi32> to vector<1xi32>
      %42 = vector.shape_cast %41 : vector<1xi32> to vector<1x1x1xi32>
      %43 = vector.extract %42[0, 0, 0] : i32 from vector<1x1x1xi32>
      %44 = vector.broadcast %34 : f32 to vector<1x8x128xf32>
      %c0_24 = arith.constant 0 : index
      %c0_25 = arith.constant 0 : index
      %c0_26 = arith.constant 0 : index
      %45 = vector.load %arg5[%c0_24, %c0_25, %c0_26] : memref<1x8x128xf32, #tpu.memory_space<vmem>>, vector<1x8x128xf32>
      tpu.vector_store %arg5[%c0_24, %c0_25, %c0_26], %44 {strides = array<i32>} : memref<1x8x128xf32, #tpu.memory_space<vmem>>, vector<1x8x128xf32>,
      %46 = vector.broadcast %43 : i32 to vector<1x8x128xi32>
      %c0_27 = arith.constant 0 : index
      %c0_28 = arith.constant 0 : index
      %c0_29 = arith.constant 0 : index
      %47 = vector.load %arg6[%c0_27, %c0_28, %c0_29] : memref<1x8x128xi32, #tpu.memory_space<vmem>>, vector<1x8x128xi32>
      tpu.vector_store %arg6[%c0_27, %c0_28, %c0_29], %46 {strides = array<i32>} : memref<1x8x128xi32, #tpu.memory_space<vmem>>, vector<1x8x128xi32>,
    } else {
    }
    return
  }
  func.func @transform_0(%arg0: i32, %arg1: i32) -> (i32, i32) {
    %c0_i32 = arith.constant 0 : i32
    %c0_i32_0 = arith.constant 0 : i32
    %c0_i32_1 = arith.constant 0 : i32
    return %c0_i32, %c0_i32_0 : i32, i32
  }
  func.func @transform_1(%arg0: i32, %arg1: i32) -> (i32, i32) {
    %c1_i32 = arith.constant 1 : i32
    %0 = arith.muli %arg0, %c1_i32 : i32
    %1 = arith.addi %0, %arg1 : i32
    %c0_i32 = arith.constant 0 : i32
    %c0_i32_0 = arith.constant 0 : i32
    return %1, %c0_i32 : i32, i32
  }
  func.func @transform_2(%arg0: i32, %arg1: i32) -> (i32, i32) {
    %c1_i32 = arith.constant 1 : i32
    %0 = arith.muli %arg0, %c1_i32 : i32
    %1 = arith.addi %0, %arg1 : i32
    %c0_i32 = arith.constant 0 : i32
    %c0_i32_0 = arith.constant 0 : i32
    return %c0_i32, %1 : i32, i32
  }
  func.func @transform_3(%arg0: i32, %arg1: i32) -> (i32, i32, i32) {
    %c0_i32 = arith.constant 0 : i32
    %c0_i32_0 = arith.constant 0 : i32
    %c0_i32_1 = arith.constant 0 : i32
    return %arg0, %c0_i32, %c0_i32_0 : i32, i32, i32
  }
  func.func @transform_4(%arg0: i32, %arg1: i32) -> (i32, i32, i32) {
    %c0_i32 = arith.constant 0 : i32
    %c0_i32_0 = arith.constant 0 : i32
    %c0_i32_1 = arith.constant 0 : i32
    return %arg0, %c0_i32, %c0_i32_0 : i32, i32, i32
  }
}

</mosaic_0001>

<llo_original>
// kernel: tpu_custom_call.1
$region0: #{tpu_custom_call.1}
  #allocation0 [shape = 'u32[]', space=smem, size = 0x4, offset = 0x4, fixed_abs, tag = 'smem constant byte address 0x4 - core index']
  #allocation1 [shape = 'u32[72,128]{1,0:T(1,128)}', space=vmem, size = 0x9000, scoped, tag = 'internal scratch']
  #allocation2 [shape = 'f32[2,512]{1,0:T(2,128)}', space=vmem, size = 0x1000, scoped, tag = 'scratch operand']
  #allocation3 [shape = 's32[2,512]{1,0:T(2,128)}', space=vmem, size = 0x1000, scoped, tag = 'scratch operand']
  %s0 = inlined_call_operand.vmem [shape: bf16[2,32], index: 0, kind: input, shape index: {}]
  %s1 = inlined_call_operand.vmem [shape: bf16[1024,32], index: 1, kind: input, shape index: {}]
  %s2 = inlined_call_operand.vmem [shape: f32[1,1024], index: 2, kind: input, shape index: {}]
  %s3 = inlined_call_operand.hbm [shape: f32[2,8,128], index: 3, kind: output, shape index: {0}]
  %s4 = inlined_call_operand.hbm [shape: s32[2,8,128], index: 4, kind: output, shape index: {1}]
  %5 = xla_tuple %s3, %s4
  %s6 = sld [smem:[#allocation0]]
  $region61: #{tpu_custom_call.1} parent=0
    _
  %s8 = ssub.s32 1, %s6
  %s9 = scalar_select 0, %s8, %s6
  $region1: #{tpu_custom_call.1} parent=0
    #allocation4 [shape = 'u8[8192]{0}', space=vmem, size = 0x2000, scoped, tag = 'output window, operand 0']
    #allocation5 [shape = 's32[2]{0}', space=sflag, size = 0x8, scoped, tag = 'scoped memory for tpu_custom_call.1']
    #allocation6 [shape = 'u8[8192]{0}', space=vmem, size = 0x2000, scoped, tag = 'output window, operand 1']
    #allocation7 [shape = 's32[2]{0}', space=sflag, size = 0x8, scoped, tag = 'scoped memory for tpu_custom_call.1']
    %10 = vsyncpa [#allocation5], 0
    %s11 = scalar_lea.sflag [#allocation5], 1
    %12 = vsyncpa %s11, 0
    %13 = vsyncpa [#allocation7], 0
    %s14 = scalar_lea.sflag [#allocation7], 1
    %15 = vsyncpa %s14, 0
    loop: start=0, step=1, limit=4
    $region2: #{tpu_custom_call.1} parent=1 // loop_pre_header
      _
    $region3: #{tpu_custom_call.1} parent=1 // loop_header
      %s17 = sphi 0, %s21
      %p18 = scmp.ge.s32.totalorder %s17, 4
      %s24 = sphi 0, %s36
      %s25 = sphi 0, %s32
      %s26 = sphi 0, %s24
      %s27 = sphi 0, %s25
      %s28 = sphi 0, %s26
      %s29 = sphi 0, %s27
      %s37 = sphi 0, %s37
      %s39 = sphi 0, %s37
      %s40 = sphi 0, %s39
      %s54 = sphi 0, %s40
      %s62 = sphi 0, %s64
      %s65 = sphi 0, %s62
      %s66 = sphi 0, %s65
      %s82 = sphi 0, %s66
      %s90 = sphi 0, %s92
      %s93 = sphi 0, %s90
      %s94 = sphi 0, %s93
      %s110 = sphi 0, %s94
      %s116 = sphi 0, %s118
      %s119 = sphi 0, %s116
      %s120 = sphi 0, %s119
      %s136 = sphi 0, %s120
      %s142 = sphi 0, %s144
      %s145 = sphi 0, %s142
      %s146 = sphi 0, %s145
      %s162 = sphi 0, %s146
    $region4: #{tpu_custom_call.1} parent=1 // loop_header_branch
      %20 = sbr.rel (%p18) target = $region8
    $region5: #{tpu_custom_call.1} parent=1 // loop_body
      %s22 = ssub.s32 %s17, 1
      %s23 = ssub.s32 %s17, 2
      %s30 = sadd.s32 1, %s25
      %p31 = scmp.ge.s32.totalorder %s30, 1
      %s32 = scalar_select %p31, 0, %s30
      %s33 = sadd.s32 1, %s24
      %s34 = scalar_select %p31, %s33, %s24
      %p35 = scmp.ge.s32.totalorder %s34, 2
      %s36 = scalar_select %p35, 0, %s34
      %s38 = sadd.s32 %s37, 1
      %p41 = scmp.eq.s32.totalorder %s17, 1
      %p42 = scmp.ne.s32.totalorder %s37, %s39
      %p43 = scmp.eq.s32.totalorder %s17, 0
      %p44 = por %p42, %p43
      %p45 = scmp.ne.s32.totalorder %s37, %s39
      %p46 = scmp.eq.s32.totalorder %s22, 1
      %p47 = por %p45, %p46
      %p48 = scmp.ne.s32.totalorder %s39, %s40
      %p49 = scmp.eq.s32.totalorder %s22, 0
      %p50 = por %p48, %p49
      %p51 = scmp.ne.s32.totalorder %s39, %s40
      %p52 = scmp.eq.s32.totalorder %s23, 1
      %p53 = por %p51, %p52
      %p55 = scmp.ne.s32.totalorder %s40, %s54
      %p56 = scmp.eq.s32.totalorder %s23, 0
      %p57 = por %p55, %p56
      %s58 = sadd.s32 %s24, %s25
      %s59 = sadd.s32 %s36, %s32
      %s60 = ssub.s32 %s58, %s59
      %p61 = scmp.eq.s32.totalorder %s60, 0
      %s63 = sadd.s32 %s62, 1
      %s64 = scalar_select %p61, %s62, %s63
      %p67 = pneg %p61
      %p68 = scmp.eq.s32.totalorder %s17, 1
      %p69 = por %p67, %p68
      %p70 = scmp.ne.s32.totalorder %s62, %s65
      %p71 = scmp.eq.s32.totalorder %s17, 0
      %p72 = por %p70, %p71
      %p73 = scmp.ne.s32.totalorder %s62, %s65
      %p74 = scmp.eq.s32.totalorder %s22, 1
      %p75 = por %p73, %p74
      %p76 = scmp.ne.s32.totalorder %s65, %s66
      %p77 = scmp.eq.s32.totalorder %s22, 0
      %p78 = por %p76, %p77
      %p79 = scmp.ne.s32.totalorder %s65, %s66
      %p80 = scmp.eq.s32.totalorder %s23, 1
      %p81 = por %p79, %p80
      %p83 = scmp.ne.s32.totalorder %s66, %s82
      %p84 = scmp.eq.s32.totalorder %s23, 0
      %p85 = por %p83, %p84
      %s86 = sadd.s32 %s24, %s25
      %s87 = sadd.s32 %s36, %s32
      %s88 = ssub.s32 %s86, %s87
      %p89 = scmp.eq.s32.totalorder %s88, 0
      %s91 = sadd.s32 %s90, 1
      %s92 = scalar_select %p89, %s90, %s91
      %p95 = pneg %p89
      %p96 = scmp.eq.s32.totalorder %s17, 1
      %p97 = por %p95, %p96
      %p98 = scmp.ne.s32.totalorder %s90, %s93
      %p99 = scmp.eq.s32.totalorder %s17, 0
      %p100 = por %p98, %p99
      %p101 = scmp.ne.s32.totalorder %s90, %s93
      %p102 = scmp.eq.s32.totalorder %s22, 1
      %p103 = por %p101, %p102
      %p104 = scmp.ne.s32.totalorder %s93, %s94
      %p105 = scmp.eq.s32.totalorder %s22, 0
      %p106 = por %p104, %p105
      %p107 = scmp.ne.s32.totalorder %s93, %s94
      %p108 = scmp.eq.s32.totalorder %s23, 1
      %p109 = por %p107, %p108
      %p111 = scmp.ne.s32.totalorder %s94, %s110
      %p112 = scmp.eq.s32.totalorder %s23, 0
      %p113 = por %p111, %p112
      %s114 = ssub.s32 %s24, %s36
      %p115 = scmp.eq.s32.totalorder %s114, 0
      %s117 = sadd.s32 %s116, 1
      %s118 = scalar_select %p115, %s116, %s117
      %p121 = pneg %p115
      %p122 = scmp.eq.s32.totalorder %s17, 1
      %p123 = por %p121, %p122
      %p124 = scmp.ne.s32.totalorder %s116, %s119
      %p125 = scmp.eq.s32.totalorder %s17, 0
      %p126 = por %p124, %p125
      %p127 = scmp.ne.s32.totalorder %s116, %s119
      %p128 = scmp.eq.s32.totalorder %s22, 1
      %p129 = por %p127, %p128
      %p130 = scmp.ne.s32.totalorder %s119, %s120
      %p131 = scmp.eq.s32.totalorder %s22, 0
      %p132 = por %p130, %p131
      %p133 = scmp.ne.s32.totalorder %s119, %s120
      %p134 = scmp.eq.s32.totalorder %s23, 1
      %p135 = por %p133, %p134
      %p137 = scmp.ne.s32.totalorder %s120, %s136
      %p138 = scmp.eq.s32.totalorder %s23, 0
      %p139 = por %p137, %p138
      %s140 = ssub.s32 %s24, %s36
      %p141 = scmp.eq.s32.totalorder %s140, 0
      %s143 = sadd.s32 %s142, 1
      %s144 = scalar_select %p141, %s142, %s143
      %p147 = pneg %p141
      %p148 = scmp.eq.s32.totalorder %s17, 1
      %p149 = por %p147, %p148
      %p150 = scmp.ne.s32.totalorder %s142, %s145
      %p151 = scmp.eq.s32.totalorder %s17, 0
      %p152 = por %p150, %p151
      %p153 = scmp.ne.s32.totalorder %s142, %s145
      %p154 = scmp.eq.s32.totalorder %s22, 1
      %p155 = por %p153, %p154
      %p156 = scmp.ne.s32.totalorder %s145, %s146
      %p157 = scmp.eq.s32.totalorder %s22, 0
      %p158 = por %p156, %p157
      %p159 = scmp.ne.s32.totalorder %s145, %s146
      %p160 = scmp.eq.s32.totalorder %s23, 1
      %p161 = por %p159, %p160
      %p163 = scmp.ne.s32.totalorder %s146, %s162
      %p164 = scmp.eq.s32.totalorder %s23, 0
      %p165 = por %p163, %p164
      %p166 = scmp.le.s32.totalorder 1, %s17
      %p167 = scmp.lt.s32.totalorder %s17, 3
      %p168 = pnand %p166, %p167
      %p169 = pneg %p168
      // Predicated region
      $region9: #{tpu_custom_call.1} parent=5 // pred_check
        _
      $region10: #{tpu_custom_call.1} parent=5 // pred_check_branch
        %171 = sbr.rel (%p168) target = $region12
      $region11: #{tpu_custom_call.1} parent=5 // pred_region
        %s172 = ssub.s32 %s17, 1
        // Predicated region
        $region13: #{tpu_custom_call.1} parent=11 // pred_check
          %p173 = pneg %p50
        $region14: #{tpu_custom_call.1} parent=11 // pred_check_branch
          %175 = sbr.rel (%p173) target = $region16
        $region15: #{tpu_custom_call.1} parent=11 // pred_region
          _
        $region16: #{tpu_custom_call.1} parent=11 // pred_fallthru
          _
      $region12: #{tpu_custom_call.1} parent=5 // pred_fallthru
        _
      %p176 = scmp.lt.s32.totalorder %s17, 2
      // Predicated region
      $region17: #{tpu_custom_call.1} parent=5 // pred_check
        %p177 = pneg %p176
      $region18: #{tpu_custom_call.1} parent=5 // pred_check_branch
        %179 = sbr.rel (%p177) target = $region20
      $region19: #{tpu_custom_call.1} parent=5 // pred_region
        // Predicated region
        $region21: #{tpu_custom_call.1} parent=19 // pred_check
          %p180 = pneg %p72
        $region22: #{tpu_custom_call.1} parent=19 // pred_check_branch
          %182 = sbr.rel (%p180) target = $region24
        $region23: #{tpu_custom_call.1} parent=19 // pred_region
          %s183 = sadd.s32 %s24, %s25
          %s184 = smul.u32 64, %s183
          %p185 = scmp.lt.s32.totalorder %s184, 127
          %s186 = scalar_select %p185, %s184, 127
          %s187 = smul.addr %s186, 4
          %s188 = scalar_lea.vmem %s1, %s187
          %s189 = sadd.s32 %s24, %s25
          %s190 = smul.u32 64, %s189
        $region24: #{tpu_custom_call.1} parent=19 // pred_fallthru
          _
        // Predicated region
        $region25: #{tpu_custom_call.1} parent=19 // pred_check
          %p191 = pneg %p100
        $region26: #{tpu_custom_call.1} parent=19 // pred_check_branch
          %193 = sbr.rel (%p191) target = $region28
        $region27: #{tpu_custom_call.1} parent=19 // pred_region
          %s194 = sadd.s32 %s24, %s25
          %s195 = smul.u32 4, %s194
          %p196 = scmp.lt.s32.totalorder %s195, 7
          %s197 = scalar_select %p196, %s195, 7
          %s198 = scalar_lea.vmem %s2, %s197
          %s199 = sadd.s32 %s24, %s25
          %s200 = smul.u32 4, %s199
        $region28: #{tpu_custom_call.1} parent=19 // pred_fallthru
          _
      $region20: #{tpu_custom_call.1} parent=5 // pred_fallthru
        _
      %p201 = scmp.le.s32.totalorder 1, %s17
      %p202 = scmp.lt.s32.totalorder %s17, 3
      %p203 = pnand %p201, %p202
      %p204 = pneg %p203
      // Predicated region
      $region29: #{tpu_custom_call.1} parent=5 // pred_check
        _
      $region30: #{tpu_custom_call.1} parent=5 // pred_check_branch
        %206 = sbr.rel (%p203) target = $region32
      $region31: #{tpu_custom_call.1} parent=5 // pred_region
        %s207 = ssub.s32 %s17, 1
        %p208 = pneg %p50
        %p209 = pneg %p47
        %s210 = sadd.s32 %s26, %s27
        %s211 = smul.u32 64, %s210
        %p212 = scmp.lt.s32.totalorder %s211, 127
        %s213 = scalar_select %p212, %s211, 127
        %s214 = smul.addr %s213, 4
        %s215 = scalar_lea.vmem %s1, %s214
        %p216 = pneg %p78
        %p217 = pneg %p75
        %s218 = sadd.s32 %s26, %s27
        %s219 = smul.u32 4, %s218
        %p220 = scmp.lt.s32.totalorder %s219, 7
        %s221 = scalar_select %p220, %s219, 7
        %s222 = scalar_lea.vmem %s2, %s221
        %p223 = pneg %p106
        %p224 = pneg %p103
        %p225 = pneg %p132
        %p226 = pneg %p129
        %s227 = sand.u32 %s119, 1
        %s228 = scalar_lea.sflag [#allocation5], %s227
        %s229 = sand.u32 %s119, 1
        %s230 = smul.addr %s229, 8
        %s231 = scalar_lea.vmem [#allocation4], %s230
        %p232 = pneg %p158
        %p233 = pneg %p155
        %s234 = sand.u32 %s145, 1
        %s235 = scalar_lea.sflag [#allocation7], %s234
        %s236 = sand.u32 %s145, 1
        %s237 = smul.addr %s236, 8
        %s238 = scalar_lea.vmem [#allocation6], %s237
        %s239 = sadd.s32 %s26, %s27
        %s240 = smul.u32 64, %s239
        %p241 = scmp.lt.s32.totalorder %s240, 127
        %s242 = scalar_select %p241, %s240, 127
        %s243 = smul.addr %s242, 4
        %s244 = scalar_lea.vmem %s1, %s243
        %s245 = sadd.s32 %s26, %s27
        %s246 = smul.u32 64, %s245
        %s247 = sadd.s32 %s26, %s27
        %s248 = smul.u32 4, %s247
        %p249 = scmp.lt.s32.totalorder %s248, 7
        %s250 = scalar_select %p249, %s248, 7
        %s251 = scalar_lea.vmem %s2, %s250
        %s252 = sadd.s32 %s26, %s27
        %s253 = smul.u32 4, %s252
        %p254 = scmp.eq.s32.totalorder %s27, 0
        // Predicated region
        $region33: #{tpu_custom_call.1} parent=31 // pred_check
          %p255 = pneg %p254
        $region34: #{tpu_custom_call.1} parent=31 // pred_check_branch
          %257 = sbr.rel (%p255) target = $region36
        $region35: #{tpu_custom_call.1} parent=31 // pred_region
          %258 = vst [vmem:[#allocation2] sm:$0xff] -inf
          %259 = vst [vmem:[#allocation3] sm:$0xff] 0
        $region36: #{tpu_custom_call.1} parent=31 // pred_fallthru
          _
        %v260 = vld [vmem:[%s0] sm:$0x1]
        %v261 = vld [vmem:[%s244] sm:$0xf]
        %v262 = vld [vmem:[%s244 + $0x4] sm:$0xf]
        %v263 = vld [vmem:[%s244 + $0x8] sm:$0xf]
        %v264 = vld [vmem:[%s244 + $0xc] sm:$0xf]
        %v265 = vld [vmem:[%s244 + $0x10] sm:$0xf]
        %v266 = vld [vmem:[%s244 + $0x14] sm:$0xf]
        %v267 = vld [vmem:[%s244 + $0x18] sm:$0xf]
        %v268 = vld [vmem:[%s244 + $0x1c] sm:$0xf]
        %v269 = vld [vmem:[%s244 + $0x20] sm:$0xf]
        %v270 = vld [vmem:[%s244 + $0x24] sm:$0xf]
        %v271 = vld [vmem:[%s244 + $0x28] sm:$0xf]
        %v272 = vld [vmem:[%s244 + $0x2c] sm:$0xf]
        %v273 = vld [vmem:[%s244 + $0x30] sm:$0xf]
        %v274 = vld [vmem:[%s244 + $0x34] sm:$0xf]
        %v275 = vld [vmem:[%s244 + $0x38] sm:$0xf]
        %v276 = vld [vmem:[%s244 + $0x3c] sm:$0xf]
        %v277 = vld [vmem:[%s244 + $0x40] sm:$0xf]
        %v278 = vld [vmem:[%s244 + $0x44] sm:$0xf]
        %v279 = vld [vmem:[%s244 + $0x48] sm:$0xf]
        %v280 = vld [vmem:[%s244 + $0x4c] sm:$0xf]
        %v281 = vld [vmem:[%s244 + $0x50] sm:$0xf]
        %v282 = vld [vmem:[%s244 + $0x54] sm:$0xf]
        %v283 = vld [vmem:[%s244 + $0x58] sm:$0xf]
        %v284 = vld [vmem:[%s244 + $0x5c] sm:$0xf]
        %v285 = vld [vmem:[%s244 + $0x60] sm:$0xf]
        %v286 = vld [vmem:[%s244 + $0x64] sm:$0xf]
        %v287 = vld [vmem:[%s244 + $0x68] sm:$0xf]
        %v288 = vld [vmem:[%s244 + $0x6c] sm:$0xf]
        %v289 = vld [vmem:[%s244 + $0x70] sm:$0xf]
        %v290 = vld [vmem:[%s244 + $0x74] sm:$0xf]
        %v291 = vld [vmem:[%s244 + $0x78] sm:$0xf]
        %v292 = vld [vmem:[%s244 + $0x7c] sm:$0xf]
        %v293 = vld [vmem:[%s244 + $0x80] sm:$0xf]
        %v294 = vld [vmem:[%s244 + $0x84] sm:$0xf]
        %v295 = vld [vmem:[%s244 + $0x88] sm:$0xf]
        %v296 = vld [vmem:[%s244 + $0x8c] sm:$0xf]
        %v297 = vld [vmem:[%s244 + $0x90] sm:$0xf]
        %v298 = vld [vmem:[%s244 + $0x94] sm:$0xf]
        %v299 = vld [vmem:[%s244 + $0x98] sm:$0xf]
        %v300 = vld [vmem:[%s244 + $0x9c] sm:$0xf]
        %v301 = vld [vmem:[%s244 + $0xa0] sm:$0xf]
        %v302 = vld [vmem:[%s244 + $0xa4] sm:$0xf]
        %v303 = vld [vmem:[%s244 + $0xa8] sm:$0xf]
        %v304 = vld [vmem:[%s244 + $0xac] sm:$0xf]
        %v305 = vld [vmem:[%s244 + $0xb0] sm:$0xf]
        %v306 = vld [vmem:[%s244 + $0xb4] sm:$0xf]
        %v307 = vld [vmem:[%s244 + $0xb8] sm:$0xf]
        %v308 = vld [vmem:[%s244 + $0xbc] sm:$0xf]
        %v309 = vld [vmem:[%s244 + $0xc0] sm:$0xf]
        %v310 = vld [vmem:[%s244 + $0xc4] sm:$0xf]
        %v311 = vld [vmem:[%s244 + $0xc8] sm:$0xf]
        %v312 = vld [vmem:[%s244 + $0xcc] sm:$0xf]
        %v313 = vld [vmem:[%s244 + $0xd0] sm:$0xf]
        %v314 = vld [vmem:[%s244 + $0xd4] sm:$0xf]
        %v315 = vld [vmem:[%s244 + $0xd8] sm:$0xf]
        %v316 = vld [vmem:[%s244 + $0xdc] sm:$0xf]
        %v317 = vld [vmem:[%s244 + $0xe0] sm:$0xf]
        %v318 = vld [vmem:[%s244 + $0xe4] sm:$0xf]
        %v319 = vld [vmem:[%s244 + $0xe8] sm:$0xf]
        %v320 = vld [vmem:[%s244 + $0xec] sm:$0xf]
        %v321 = vld [vmem:[%s244 + $0xf0] sm:$0xf]
        %v322 = vld [vmem:[%s244 + $0xf4] sm:$0xf]
        %v323 = vld [vmem:[%s244 + $0xf8] sm:$0xf]
        %v324 = vld [vmem:[%s244 + $0xfc] sm:$0xf]
        %v325 = vld [vmem:[%s251] sm:$0xf]
        %v327 = vperm.slane %v325, 0
        %v328 = vperm.slane %v325, 1
        %v329 = vperm.slane %v325, 2
        %v330 = vperm.slane %v325, 3
        %v399 = vunpack.c.l.b16 %v261
        %v400 = vunpack.c.l.b16 %v262
        %v401 = vunpack.c.l.b16 %v263
        %v402 = vunpack.c.l.b16 %v264
        %v403 = vunpack.c.l.b16 %v265
        %v404 = vunpack.c.l.b16 %v266
        %v405 = vunpack.c.l.b16 %v267
        %v406 = vunpack.c.l.b16 %v268
        %v407 = vunpack.c.l.b16 %v269
        %v408 = vunpack.c.l.b16 %v270
        %v409 = vunpack.c.l.b16 %v271
        %v410 = vunpack.c.l.b16 %v272
        %v411 = vunpack.c.l.b16 %v273
        %v412 = vunpack.c.l.b16 %v274
        %v413 = vunpack.c.l.b16 %v275
        %v414 = vunpack.c.l.b16 %v276
        %v415 = vunpack.c.l.b16 %v277
        %v416 = vunpack.c.l.b16 %v278
        %v417 = vunpack.c.l.b16 %v279
        %v418 = vunpack.c.l.b16 %v280
        %v419 = vunpack.c.l.b16 %v281
        %v420 = vunpack.c.l.b16 %v282
        %v421 = vunpack.c.l.b16 %v283
        %v422 = vunpack.c.l.b16 %v284
        %v423 = vunpack.c.l.b16 %v285
        %v424 = vunpack.c.l.b16 %v286
        %v425 = vunpack.c.l.b16 %v287
        %v426 = vunpack.c.l.b16 %v288
        %v427 = vunpack.c.l.b16 %v289
        %v428 = vunpack.c.l.b16 %v290
        %v429 = vunpack.c.l.b16 %v291
        %v430 = vunpack.c.l.b16 %v292
        %v431 = vunpack.c.l.b16 %v293
        %v432 = vunpack.c.l.b16 %v294
        %v433 = vunpack.c.l.b16 %v295
        %v434 = vunpack.c.l.b16 %v296
        %v435 = vunpack.c.l.b16 %v297
        %v436 = vunpack.c.l.b16 %v298
        %v437 = vunpack.c.l.b16 %v299
        %v438 = vunpack.c.l.b16 %v300
        %v439 = vunpack.c.l.b16 %v301
        %v440 = vunpack.c.l.b16 %v302
        %v441 = vunpack.c.l.b16 %v303
        %v442 = vunpack.c.l.b16 %v304
        %v443 = vunpack.c.l.b16 %v305
        %v444 = vunpack.c.l.b16 %v306
        %v445 = vunpack.c.l.b16 %v307
        %v446 = vunpack.c.l.b16 %v308
        %v447 = vunpack.c.l.b16 %v309
        %v448 = vunpack.c.l.b16 %v310
        %v449 = vunpack.c.l.b16 %v311
        %v450 = vunpack.c.l.b16 %v312
        %v451 = vunpack.c.l.b16 %v313
        %v452 = vunpack.c.l.b16 %v314
        %v453 = vunpack.c.l.b16 %v315
        %v454 = vunpack.c.l.b16 %v316
        %v455 = vunpack.c.l.b16 %v317
        %v456 = vunpack.c.l.b16 %v318
        %v457 = vunpack.c.l.b16 %v319
        %v458 = vunpack.c.l.b16 %v320
        %v459 = vunpack.c.l.b16 %v321
        %v460 = vunpack.c.l.b16 %v322
        %v461 = vunpack.c.l.b16 %v323
        %v462 = vunpack.c.l.b16 %v324
        %v463 = vpack.c.b16 %v400, %v399
        %v464 = vpack.c.b16 %v402, %v401
        %v465 = vpack.c.b16 %v404, %v403
        %v466 = vpack.c.b16 %v406, %v405
        %v467 = vpack.c.b16 %v408, %v407
        %v468 = vpack.c.b16 %v410, %v409
        %v469 = vpack.c.b16 %v412, %v411
        %v470 = vpack.c.b16 %v414, %v413
        %v471 = vpack.c.b16 %v416, %v415
        %v472 = vpack.c.b16 %v418, %v417
        %v473 = vpack.c.b16 %v420, %v419
        %v474 = vpack.c.b16 %v422, %v421
        %v475 = vpack.c.b16 %v424, %v423
        %v476 = vpack.c.b16 %v426, %v425
        %v477 = vpack.c.b16 %v428, %v427
        %v478 = vpack.c.b16 %v430, %v429
        %v479 = vpack.c.b16 %v432, %v431
        %v480 = vpack.c.b16 %v434, %v433
        %v481 = vpack.c.b16 %v436, %v435
        %v482 = vpack.c.b16 %v438, %v437
        %v483 = vpack.c.b16 %v440, %v439
        %v484 = vpack.c.b16 %v442, %v441
        %v485 = vpack.c.b16 %v444, %v443
        %v486 = vpack.c.b16 %v446, %v445
        %v487 = vpack.c.b16 %v448, %v447
        %v488 = vpack.c.b16 %v450, %v449
        %v489 = vpack.c.b16 %v452, %v451
        %v490 = vpack.c.b16 %v454, %v453
        %v491 = vpack.c.b16 %v456, %v455
        %v492 = vpack.c.b16 %v458, %v457
        %v493 = vpack.c.b16 %v460, %v459
        %v494 = vpack.c.b16 %v462, %v461
        %vm495 = vcmask 261120
        %v497 = vsel %vm495, %v260, 0
        %v500 = vsel %vm495, %v463, 0
        %v503 = vsel %vm495, %v464, 0
        %v506 = vsel %vm495, %v465, 0
        %v509 = vsel %vm495, %v466, 0
        %v512 = vsel %vm495, %v467, 0
        %v515 = vsel %vm495, %v468, 0
        %v518 = vsel %vm495, %v469, 0
        %v521 = vsel %vm495, %v470, 0
        %v524 = vsel %vm495, %v471, 0
        %v527 = vsel %vm495, %v472, 0
        %v530 = vsel %vm495, %v473, 0
        %v533 = vsel %vm495, %v474, 0
        %v536 = vsel %vm495, %v475, 0
        %v539 = vsel %vm495, %v476, 0
        %v542 = vsel %vm495, %v477, 0
        %v545 = vsel %vm495, %v478, 0
        %v548 = vsel %vm495, %v479, 0
        %v551 = vsel %vm495, %v480, 0
        %v554 = vsel %vm495, %v481, 0
        %v557 = vsel %vm495, %v482, 0
        %v560 = vsel %vm495, %v483, 0
        %v563 = vsel %vm495, %v484, 0
        %v566 = vsel %vm495, %v485, 0
        %v569 = vsel %vm495, %v486, 0
        %v572 = vsel %vm495, %v487, 0
        %v575 = vsel %vm495, %v488, 0
        %v578 = vsel %vm495, %v489, 0
        %v581 = vsel %vm495, %v490, 0
        %v584 = vsel %vm495, %v491, 0
        %v587 = vsel %vm495, %v492, 0
        %v590 = vsel %vm495, %v493, 0
        %v593 = vsel %vm495, %v494, 0
        %595 = vmatpush.bf16.xpose.msra.mxu0 %v521
        %596 = vmatpush.bf16.xpose.msra.mxu0 %v518
        %597 = vmatpush.bf16.xpose.msra.mxu0 %v515
        %598 = vmatpush.bf16.xpose.msra.mxu0 %v512
        %599 = vmatpush.bf16.xpose.msra.mxu0 %v509
        %600 = vmatpush.bf16.xpose.msra.mxu0 %v506
        %601 = vmatpush.bf16.xpose.msra.mxu0 %v503
        %602 = vmatpush.bf16.xpose.msra.mxu0 %v500
        %603 = vmatmul.bf16.gmra.mxu0 %v497
        %v604 = vpop.f32.mrf.mxu0
        %v605 = vadd.f32 %v327, %v604
        %v606 = vpop.f32.mrf.mxu0
        %607 = vdwg.mxu0
        %608 = vmatpush.bf16.xpose.msra.mxu0 %v545
        %609 = vmatpush.bf16.xpose.msra.mxu0 %v542
        %610 = vmatpush.bf16.xpose.msra.mxu0 %v539
        %611 = vmatpush.bf16.xpose.msra.mxu0 %v536
        %612 = vmatpush.bf16.xpose.msra.mxu0 %v533
        %613 = vmatpush.bf16.xpose.msra.mxu0 %v530
        %614 = vmatpush.bf16.xpose.msra.mxu0 %v527
        %615 = vmatpush.bf16.xpose.msra.mxu0 %v524
        %616 = vmatmul.bf16.gmra.mxu0 %v497
        %v617 = vpop.f32.mrf.mxu0
        %v618 = vadd.f32 %v328, %v617
        %v619 = vpop.f32.mrf.mxu0
        %620 = vdwg.mxu0
        %621 = vmatpush.bf16.xpose.msra.mxu0 %v569
        %622 = vmatpush.bf16.xpose.msra.mxu0 %v566
        %623 = vmatpush.bf16.xpose.msra.mxu0 %v563
        %624 = vmatpush.bf16.xpose.msra.mxu0 %v560
        %625 = vmatpush.bf16.xpose.msra.mxu0 %v557
        %626 = vmatpush.bf16.xpose.msra.mxu0 %v554
        %627 = vmatpush.bf16.xpose.msra.mxu0 %v551
        %628 = vmatpush.bf16.xpose.msra.mxu0 %v548
        %629 = vmatmul.bf16.gmra.mxu0 %v497
        %v630 = vpop.f32.mrf.mxu0
        %v631 = vadd.f32 %v329, %v630
        %v632 = vpop.f32.mrf.mxu0
        %633 = vdwg.mxu0
        %634 = vmatpush.bf16.xpose.msra.mxu0 %v593
        %635 = vmatpush.bf16.xpose.msra.mxu0 %v590
        %636 = vmatpush.bf16.xpose.msra.mxu0 %v587
        %637 = vmatpush.bf16.xpose.msra.mxu0 %v584
        %638 = vmatpush.bf16.xpose.msra.mxu0 %v581
        %639 = vmatpush.bf16.xpose.msra.mxu0 %v578
        %640 = vmatpush.bf16.xpose.msra.mxu0 %v575
        %641 = vmatpush.bf16.xpose.msra.mxu0 %v572
        %642 = vmatmul.bf16.gmra.mxu0 %v497
        %v643 = vpop.f32.mrf.mxu0
        %v644 = vadd.f32 %v330, %v643
        %v645 = vpop.f32.mrf.mxu0
        %646 = vdwg.mxu0
        %s647 = sadd.s32 %s26, %s27
        %s648 = smul.u32 %s647, 512
        %v649 = vlaneseq
        %v650 = vshrl.u32 %v649, 7
        %v651 = vlaneseq
        %v652 = vand.u32 %v651, 127
        %v653 = vadd.s32 %v652, 128
        %v654 = vadd.s32 %v652, 256
        %v655 = vadd.s32 %v652, 384
        %v656 = vmul.u32 %v650, 1000
        %v657 = vstv %s648
        %v658 = vadd.s32 %v657, %v652
        %v659 = vadd.s32 %v657, %v653
        %v660 = vadd.s32 %v657, %v654
        %v661 = vadd.s32 %v657, %v655
        %v662 = vadd.s32 %v656, %v658
        %v663 = vadd.s32 %v656, %v659
        %v664 = vadd.s32 %v656, %v660
        %v665 = vadd.s32 %v656, %v661
        %v666 = vld [vmem:[#allocation2] sm:$0xff]
        %668 = vst [vmem:[#allocation1] ss:$4 sm:$0xff] %v666
        %v669 = vld.sshfl [vmem:[#allocation1] sm:$0xff pattern:$0x73625140]
        %v670 = vld.sshfl [vmem:[#allocation1 + $0x8] sm:$0xff pattern:$0x73625140]
        %v671 = vld.sshfl [vmem:[#allocation1 + $0x10] sm:$0xff pattern:$0x73625140]
        %v672 = vld.sshfl [vmem:[#allocation1 + $0x18] sm:$0xff pattern:$0x73625140]
        %vm677 = vcmp.gt.f32.partialorder %v605, %v669
        %vm678 = vcmp.gt.f32.partialorder %v618, %v670
        %vm679 = vcmp.gt.f32.partialorder %v631, %v671
        %vm680 = vcmp.gt.f32.partialorder %v644, %v672
        %681 = vst [vmem:[#allocation1] ss:$4 sm:$0xff] %v666
        %v682 = vld.sshfl [vmem:[#allocation1] sm:$0xff pattern:$0x73625140]
        %v683 = vld.sshfl [vmem:[#allocation1 + $0x8] sm:$0xff pattern:$0x73625140]
        %v684 = vld.sshfl [vmem:[#allocation1 + $0x10] sm:$0xff pattern:$0x73625140]
        %v685 = vld.sshfl [vmem:[#allocation1 + $0x18] sm:$0xff pattern:$0x73625140]
        %v690 = vsel %vm677, %v605, %v682
        %v691 = vsel %vm678, %v618, %v683
        %v692 = vsel %vm679, %v631, %v684
        %v693 = vsel %vm680, %v644, %v685
        %v698 = vrot.slane %v691, 6
        %v699 = vrot.slane %v692, 4
        %v700 = vrot.slane %v693, 2
        %vm701 = vcmask 1041408
        %v702 = vsel %vm701, %v690, %v698
        %vm703 = vcmask 1045508
        %v704 = vsel %vm703, %v699, %v700
        %vm705 = vcmask 1043456
        %v706 = vsel %vm705, %v702, %v704
        %708 = vst [vmem:[#allocation2] sm:$0xff] %v706
        %v709 = vld [vmem:[#allocation3] sm:$0xff]
        %710 = vst [vmem:[#allocation1] ss:$4 sm:$0xff] %v709
        %v711 = vld.sshfl [vmem:[#allocation1] sm:$0xff pattern:$0x73625140]
        %v712 = vld.sshfl [vmem:[#allocation1 + $0x8] sm:$0xff pattern:$0x73625140]
        %v713 = vld.sshfl [vmem:[#allocation1 + $0x10] sm:$0xff pattern:$0x73625140]
        %v714 = vld.sshfl [vmem:[#allocation1 + $0x18] sm:$0xff pattern:$0x73625140]
        %v715 = vsel %vm677, %v662, %v711
        %v716 = vsel %vm678, %v663, %v712
        %v717 = vsel %vm679, %v664, %v713
        %v718 = vsel %vm680, %v665, %v714
        %v719 = vrot.slane %v716, 6
        %v720 = vrot.slane %v717, 4
        %v721 = vrot.slane %v718, 2
        %v722 = vsel %vm701, %v715, %v719
        %v723 = vsel %vm703, %v720, %v721
        %v724 = vsel %vm705, %v722, %v723
        %725 = vst [vmem:[#allocation3] sm:$0xff] %v724
        // Predicated region
        $region37: #{tpu_custom_call.1} parent=31 // pred_check
          %p726 = pneg %p254
        $region38: #{tpu_custom_call.1} parent=31 // pred_check_branch
          %728 = sbr.rel (%p726) target = $region40
        $region39: #{tpu_custom_call.1} parent=31 // pred_region
          %v729 = vld [vmem:[#allocation2] sm:$0xff]
          %731 = vst [vmem:[#allocation1] ss:$4 sm:$0xff] %v729
          %v732 = vld.sshfl [vmem:[#allocation1] sm:$0xff pattern:$0x73625140]
          %v733 = vld.sshfl [vmem:[#allocation1 + $0x8] sm:$0xff pattern:$0x73625140]
          %v734 = vld.sshfl [vmem:[#allocation1 + $0x10] sm:$0xff pattern:$0x73625140]
          %v735 = vld.sshfl [vmem:[#allocation1 + $0x18] sm:$0xff pattern:$0x73625140]
          %v740 = vsel %vm701, %v732, -inf
          %v741 = vsel %vm701, %v733, -inf
          %v742 = vsel %vm701, %v734, -inf
          %v743 = vsel %vm701, %v735, -inf
          %v744 = vmax.f32 %v740, %v741
          %v745 = vmax.f32 %v742, %v743
          %v746 = vmax.f32 %v744, %v745
          %747 = vmax.xlane.f32.xlu0 %v746
          %v748 = vpop.xlane.xlu0 %747
          %v749 = vrot.slane %v748, 4
          %v750 = vmax.f32 %v748, %v749
          %v751 = vrot.slane %v750, 2
          %v752 = vmax.f32 %v750, %v751
          %v753 = vrot.slane %v752, 1
          %v754 = vmax.f32 %v752, %v753
          %s755 = vtos %v754
          %v756 = vstv %s755
          %vm757 = vcmp.eq.f32.partialorder %v729, %v756
          %v758 = vld [vmem:[#allocation3] sm:$0xff]
          %v759 = vsel %vm757, %v758, 2147483647
          %760 = vst [vmem:[#allocation1] ss:$4 sm:$0xff] %v759
          %v761 = vld.sshfl [vmem:[#allocation1] sm:$0xff pattern:$0x73625140]
          %v762 = vld.sshfl [vmem:[#allocation1 + $0x8] sm:$0xff pattern:$0x73625140]
          %v763 = vld.sshfl [vmem:[#allocation1 + $0x10] sm:$0xff pattern:$0x73625140]
          %v764 = vld.sshfl [vmem:[#allocation1 + $0x18] sm:$0xff pattern:$0x73625140]
          %v765 = vsel %vm701, %v761, 2147483647
          %v766 = vsel %vm701, %v762, 2147483647
          %v767 = vsel %vm701, %v763, 2147483647
          %v768 = vsel %vm701, %v764, 2147483647
          %vm769 = vcmp.lt.s32.totalorder %v765, %v766
          %v770 = vsel %vm769, %v765, %v766
          %vm771 = vcmp.lt.s32.totalorder %v767, %v768
          %v772 = vsel %vm771, %v767, %v768
          %vm773 = vcmp.lt.s32.totalorder %v770, %v772
          %v774 = vsel %vm773, %v770, %v772
          %v775 = vand.u32 %v774, 65535
          %v776 = vshra.s32 %v774, 16
          %v777 = vcvt.s32.f32 %v775
          %v778 = vcvt.s32.f32 %v776
          %779 = vmin.xlane.f32.xlu0 %v778
          %v780 = vpop.xlane.xlu0 %779
          %vm781 = vcmp.eq.f32.partialorder %v778, %v780
          %v782 = vsel %vm781, %v777, inf
          %783 = vmin.xlane.f32.xlu0 %v782
          %v784 = vpop.xlane.xlu0 %783
          %v785 = vcvt.f32.s32 %v784
          %v786 = vcvt.f32.s32 %v780
          %v787 = vshll.u32 %v786, 16
          %v788 = vadd.s32 %v787, %v785
          %v789 = vrot.slane %v788, 4
          %vm790 = vcmp.lt.s32.totalorder %v788, %v789
          %v791 = vsel %vm790, %v788, %v789
          %v792 = vrot.slane %v791, 2
          %vm793 = vcmp.lt.s32.totalorder %v791, %v792
          %v794 = vsel %vm793, %v791, %v792
          %v795 = vrot.slane %v794, 1
          %vm796 = vcmp.lt.s32.totalorder %v794, %v795
          %v797 = vsel %vm796, %v794, %v795
          %s798 = vtos %v797
          %799 = vst [vmem:[%s231] sm:$0xff] %v756
          %v800 = vstv %s798
          %801 = vst [vmem:[%s238] sm:$0xff] %v800
        $region40: #{tpu_custom_call.1} parent=31 // pred_fallthru
          _
        %s802 = sand.u32 %s119, 1
        %s803 = scalar_lea.sflag [#allocation5], %s802
        %s804 = sand.u32 %s119, 1
        %s805 = smul.addr %s804, 8
        %s806 = scalar_lea.vmem [#allocation4], %s805
        %s807 = sand.u32 %s145, 1
        %s808 = scalar_lea.sflag [#allocation7], %s807
        %s809 = sand.u32 %s145, 1
        %s810 = smul.addr %s809, 8
        %s811 = scalar_lea.vmem [#allocation6], %s810
        // Predicated region
        $region41: #{tpu_custom_call.1} parent=31 // pred_check
          %p812 = pneg %p129
        $region42: #{tpu_custom_call.1} parent=31 // pred_check_branch
          %814 = sbr.rel (%p812) target = $region44
        $region43: #{tpu_custom_call.1} parent=31 // pred_region
          %816 = vsyncadd %s803, 0
          %s817 = smul.addr %s26, 8
          %s818 = scalar_lea.hbm %s3, %s817
          %s820 = sshll.u32 %s806, 4
          %s821 = int_to_ptr.vmem [resolvable:$true] %s820
          %s822 = sshll.u32 %s818, 4
          %s823 = int_to_ptr.hbm [resolvable:$true] %s822
          %825 = dma.vmem_to_hbm [thread:$0]  %s821, 128, %s823, %s803
        $region44: #{tpu_custom_call.1} parent=31 // pred_fallthru
          _
        // Predicated region
        $region45: #{tpu_custom_call.1} parent=31 // pred_check
          %p826 = pneg %p155
        $region46: #{tpu_custom_call.1} parent=31 // pred_check_branch
          %828 = sbr.rel (%p826) target = $region48
        $region47: #{tpu_custom_call.1} parent=31 // pred_region
          %830 = vsyncadd %s808, 0
          %s831 = smul.addr %s26, 8
          %s832 = scalar_lea.hbm %s4, %s831
          %s834 = sshll.u32 %s811, 4
          %s835 = int_to_ptr.vmem [resolvable:$true] %s834
          %s836 = sshll.u32 %s832, 4
          %s837 = int_to_ptr.hbm [resolvable:$true] %s836
          %839 = dma.vmem_to_hbm [thread:$0]  %s835, 128, %s837, %s808
        $region48: #{tpu_custom_call.1} parent=31 // pred_fallthru
          _
      $region32: #{tpu_custom_call.1} parent=5 // pred_fallthru
        _
      %p840 = scmp.le.s32.totalorder 2, %s17
      // Predicated region
      $region49: #{tpu_custom_call.1} parent=5 // pred_check
        %p841 = pneg %p840
      $region50: #{tpu_custom_call.1} parent=5 // pred_check_branch
        %843 = sbr.rel (%p841) target = $region52
      $region51: #{tpu_custom_call.1} parent=5 // pred_region
        %s844 = ssub.s32 %s17, 2
        // Predicated region
        $region53: #{tpu_custom_call.1} parent=51 // pred_check
          %p845 = pneg %p135
        $region54: #{tpu_custom_call.1} parent=51 // pred_check_branch
          %847 = sbr.rel (%p845) target = $region56
        $region55: #{tpu_custom_call.1} parent=51 // pred_region
          %s848 = sand.u32 %s120, 1
          %s849 = scalar_lea.sflag [#allocation5], %s848
          %s850 = sand.u32 %s120, 1
          %s851 = smul.addr %s850, 8
          %s852 = scalar_lea.vmem [#allocation4], %s851
          %854 = dma.done %s849, 128
        $region56: #{tpu_custom_call.1} parent=51 // pred_fallthru
          _
        // Predicated region
        $region57: #{tpu_custom_call.1} parent=51 // pred_check
          %p855 = pneg %p161
        $region58: #{tpu_custom_call.1} parent=51 // pred_check_branch
          %857 = sbr.rel (%p855) target = $region60
        $region59: #{tpu_custom_call.1} parent=51 // pred_region
          %s858 = sand.u32 %s146, 1
          %s859 = scalar_lea.sflag [#allocation7], %s858
          %s860 = sand.u32 %s146, 1
          %s861 = smul.addr %s860, 8
          %s862 = scalar_lea.vmem [#allocation6], %s861
          %864 = dma.done %s859, 128
        $region60: #{tpu_custom_call.1} parent=51 // pred_fallthru
          _
      $region52: #{tpu_custom_call.1} parent=5 // pred_fallthru
        _
    $region6: #{tpu_custom_call.1} parent=1 // loop_footer
      %s21 = sadd.s32 1, %s17
    $region7: #{tpu_custom_call.1} parent=1 // loop_footer_branch
      %16 = sbr.rel target = $region3
    $region8: #{tpu_custom_call.1} parent=1 // loop_exit
      _
    %865 = vsyncpa [#allocation5], 1
    %s866 = scalar_lea.sflag [#allocation5], 1
    %867 = vsyncpa %s866, 1
    %868 = vsyncpa [#allocation7], 1
    %s869 = scalar_lea.sflag [#allocation7], 1
    %870 = vsyncpa %s869, 1

</llo_original>
